<compile_context>
chip_gen: v7x
topology: tpu7x:2x2x1
jax: 0.10.0
libtpu: 0.0.40
codegen_flags: <defaults>
</compile_context>

<pallas_src>
import functools
import math

import jax
import jax.numpy as jnp
from jax.experimental import pallas as pl
from jax.experimental.pallas import tpu as pltpu


def _bpr_loss_kernel(pos_ref, neg_ref, out_ref, *, inv_n: float):
    # Elementwise prologue in the native input dtype (bf16 stays bf16 on the
    # VPU for v6e/v7x; the compiler transparently widens on v5e).
    neg_diff = neg_ref[...] - pos_ref[...]  # == -(pos - neg)
    mx = jnp.maximum(neg_diff, jnp.zeros_like(neg_diff)).astype(jnp.float32)
    ab = jnp.abs(neg_diff).astype(jnp.float32)
    # -log(sigmoid(d)) == softplus(-d) = max(-d, 0) + log1p(exp(-|d|)).
    # exp argument is <= 0, so this never overflows (stable for any d).
    loss = mx + jnp.log1p(jnp.exp(-ab))  # f32; exp+log1p on the EUP slot
    # Lane-axis sum (XLU) -> (tb,), scale by 1/N, store as a lane-dense (1, tb)
    # row (unmasked vst; avoids the (tb, 128) lane padding of a (tb, 1) block).
    out_ref[...] = (jnp.sum(loss, axis=-1) * inv_n)[None, :]


def _vmem_limit_bytes() -> int:
    """48 MiB on 128-MiB-VMEM parts (v5e/v6e); ~32 MiB on v7x (64 MiB)."""
    cap = 128 * 1024 * 1024
    try:
        info = pltpu.get_tpu_info()
        cap = int(getattr(info, "vmem_capacity_bytes", cap))
    except Exception:
        pass
    return min(48 * 1024 * 1024, cap // 2)


def _choose_tb(batch: int, n: int, itemsize: int, vmem_limit: int) -> int:
    """Pick the batch tile (rows per grid step), dtype- and VMEM-aware."""
    row_bytes = 2 * n * itemsize  # both operands, one row, native dtype
    # Small problems: one full-batch block (full-dim block shapes are always
    # legal; pipelining buys nothing when a single step covers everything).
    if batch * row_bytes <= 8 * 1024 * 1024:
        return batch
    # Target several MiB of input DMA per grid step (measured sweeps show
    # 512 KiB -> 4 MiB blocks go ~63% -> ~86% of HBM roofline), bounded so
    # double-buffered inputs stay well under the VMEM limit.
    step_budget = min(8 * 1024 * 1024, vmem_limit // 6)
    tb = max(1, step_budget // row_bytes)
    # Keep >= ~8 grid steps so the DMA pipeline stays full and both v7x
    # TensorCores get work under dimension_semantics=("parallel",).
    tb = min(tb, pl.cdiv(batch, 8))
    # Multiple of 128 keeps the (1, tb) output block lane-dense and the
    # (tb, N) input block sublane-aligned.  (Huge-N inputs would need a
    # lane-axis-tiled variant; typical rechub N is small.)
    tb = max(128, (tb // 128) * 128)
    return min(tb, batch)


def bpr_loss(pos_score: jax.Array, neg_score: jax.Array, *, tile_rows=None) -> jax.Array:
    """mean(-log(sigmoid(pos - neg)), axis=-1) via a tiled Pallas TPU kernel."""
    assert pos_score.shape == neg_score.shape
    assert pos_score.dtype == neg_score.dtype
    orig_dtype = pos_score.dtype
    *lead, N = pos_score.shape
    B = math.prod(lead) if lead else 1
    pos2 = pos_score.reshape(B, N)
    neg2 = neg_score.reshape(B, N)

    itemsize = jnp.dtype(orig_dtype).itemsize
    vmem_limit = _vmem_limit_bytes()
    tb = tile_rows if tile_rows is not None else _choose_tb(B, N, itemsize, vmem_limit)
    tb = min(tb, B)
    grid_b = pl.cdiv(B, tb)

    kernel = functools.partial(_bpr_loss_kernel, inv_n=float(1.0 / N))

    out = pl.pallas_call(
        kernel,
        out_shape=jax.ShapeDtypeStruct((1, grid_b * tb), jnp.float32),
        grid=(grid_b,),
        in_specs=[
            pl.BlockSpec((tb, N), lambda i: (i, 0)),
            pl.BlockSpec((tb, N), lambda i: (i, 0)),
        ],
        out_specs=pl.BlockSpec((1, tb), lambda i: (0, i)),
        compiler_params=pltpu.CompilerParams(
            dimension_semantics=("parallel",),
            vmem_limit_bytes=vmem_limit,
        ),
        cost_estimate=pl.CostEstimate(
            flops=5 * B * N,
            transcendentals=2 * B * N,
            bytes_accessed=2 * B * N * itemsize + 4 * B,
        ),
    )(pos2, neg2)

    # Tail rows written by the ragged last block hold garbage and are sliced
    # off here; the per-row reduction guarantees they never touch valid rows.
    loss = out[0, :B].astype(orig_dtype)
    return loss.reshape(tuple(lead))


if __name__ == "__main__":
    key = jax.random.PRNGKey(0)
    k_pos, k_neg = jax.random.split(key)
    B, N = 8, 128
    pos_score = jax.random.normal(k_pos, (B, N), dtype=jnp.float32)
    neg_score = jax.random.normal(k_neg, (B, N), dtype=jnp.float32)

    # f32 path.
    loss = jax.block_until_ready(bpr_loss(pos_score, neg_score))
    ref = jnp.mean(jax.nn.softplus(-(pos_score - neg_score)), axis=-1)
    assert loss.shape == (B,)
    assert jnp.allclose(loss, ref, atol=1e-5, rtol=1e-5)

    # bf16 path: native-dtype DMA + bf16 VPU prologue, f32 exp/log1p/sum.
    loss_bf16 = jax.block_until_ready(
        bpr_loss(pos_score.astype(jnp.bfloat16), neg_score.astype(jnp.bfloat16))
    )
    assert loss_bf16.shape == (B,)
    assert loss_bf16.dtype == jnp.bfloat16
    assert jnp.allclose(loss_bf16.astype(jnp.float32), ref, atol=2e-2, rtol=2e-2)

    # Ragged-grid path (B not a multiple of the batch tile) exercised with a
    # forced small tile to validate the no-padding code path at small shapes.
    B2, N2 = 300, 128
    p2 = jax.random.normal(k_pos, (B2, N2), dtype=jnp.float32)
    n2 = jax.random.normal(k_neg, (B2, N2), dtype=jnp.float32)
    l2 = jax.block_until_ready(bpr_loss(p2, n2, tile_rows=128))
    ref2 = jnp.mean(jax.nn.softplus(-(p2 - n2)), axis=-1)
    assert l2.shape == (B2,)
    assert jnp.allclose(l2, ref2, atol=1e-5, rtol=1e-5)

    print("KERNEL_OK")
</pallas_src>

<mosaic_0001>
module attributes {stable_mosaic.version = 11 : i64} {
  func.func @_bpr_loss_kernel(%arg0: i32, %arg1: memref<8x128xf32, #tpu.memory_space<vmem>>, %arg2: memref<8x128xf32, #tpu.memory_space<vmem>>, %arg3: memref<1x8xf32, #tpu.memory_space<vmem>>) attributes {dimension_semantics = [#tpu.dimension_semantics<parallel>], iteration_bounds = array<i64: 1>, scalar_prefetch = 0 : i64, scratch_operands = 0 : i64, tpu.core_type = #tpu.core_type<tc>, window_params = [{transform_indices = @transform_0, window_bounds = array<i64: 8, 128>}, {transform_indices = @transform_1, window_bounds = array<i64: 8, 128>}, {transform_indices = @transform_2, window_bounds = array<i64: 1, 8>}]} {
    %c0 = arith.constant 0 : index
    %c0_0 = arith.constant 0 : index
    %0 = vector.load %arg2[%c0, %c0_0] : memref<8x128xf32, #tpu.memory_space<vmem>>, vector<8x128xf32>
    %c0_1 = arith.constant 0 : index
    %c0_2 = arith.constant 0 : index
    %1 = vector.load %arg1[%c0_1, %c0_2] : memref<8x128xf32, #tpu.memory_space<vmem>>, vector<8x128xf32>
    %2 = arith.subf %0, %1 : vector<8x128xf32>
    %cst = arith.constant 0.000000e+00 : f32
    %3 = vector.broadcast %cst : f32 to vector<8x128xf32>
    %4 = arith.maximumf %2, %3 : vector<8x128xf32>
    %5 = math.absf %2 : vector<8x128xf32>
    %cst_3 = arith.constant 0.000000e+00 : f32
    %6 = vector.broadcast %cst_3 : f32 to vector<8x128xf32>
    %7 = arith.subf %6, %5 : vector<8x128xf32>
    %8 = math.exp %7 : vector<8x128xf32>
    %9 = math.log1p %8 : vector<8x128xf32>
    %10 = arith.addf %4, %9 : vector<8x128xf32>
    %cst_4 = arith.constant dense<0.000000e+00> : vector<8xf32>
    %11 = vector.multi_reduction <add>, %10, %cst_4 [1] : vector<8x128xf32> to vector<8xf32>
    %cst_5 = arith.constant 7.812500e-03 : f32
    %12 = vector.broadcast %cst_5 : f32 to vector<8xf32>
    %13 = arith.mulf %11, %12 : vector<8xf32>
    %14 = vector.shape_cast %13 : vector<8xf32> to vector<1x8xf32>
    %c0_6 = arith.constant 0 : index
    %c0_7 = arith.constant 0 : index
    %15 = vector.load %arg3[%c0_6, %c0_7] : memref<1x8xf32, #tpu.memory_space<vmem>>, vector<1x8xf32>
    tpu.vector_store %arg3[%c0_6, %c0_7], %14 {strides = array<i32>} : memref<1x8xf32, #tpu.memory_space<vmem>>, vector<1x8xf32>,
    return
  }
  func.func @transform_0(%arg0: i32) -> (i32, i32) {
    %c0_i32 = arith.constant 0 : i32
    %c0_i32_0 = arith.constant 0 : i32
    return %arg0, %c0_i32 : i32, i32
  }
  func.func @transform_1(%arg0: i32) -> (i32, i32) {
    %c0_i32 = arith.constant 0 : i32
    %c0_i32_0 = arith.constant 0 : i32
    return %arg0, %c0_i32 : i32, i32
  }
  func.func @transform_2(%arg0: i32) -> (i32, i32) {
    %c0_i32 = arith.constant 0 : i32
    %c0_i32_0 = arith.constant 0 : i32
    return %c0_i32, %arg0 : i32, i32
  }
}

</mosaic_0001>

<llo_original>
// kernel: tpu_custom_call.1
$region0: #{tpu_custom_call.1}
  #allocation0 [shape = 'u32[]', space=smem, size = 0x4, offset = 0x4, fixed_abs, tag = 'smem constant byte address 0x4 - core index']
  #allocation1 [shape = 'u32[144,128]{1,0:T(1,128)}', space=vmem, size = 0x12000, scoped, tag = 'internal scratch']
  %s0 = inlined_call_operand.hbm [shape: f32[8,128], index: 0, kind: input, shape index: {}]
  %s1 = inlined_call_operand.hbm [shape: f32[8,128], index: 1, kind: input, shape index: {}]
  %s2 = inlined_call_operand.hbm [shape: f32[1,8], index: 2, kind: output, shape index: {}]
  %s3 = sld [smem:[#allocation0]]
  $region26: #{tpu_custom_call.1} parent=0
    _
  %s5 = ssub.s32 1, %s3
  %s6 = scalar_select 0, %s5, %s3
  $region1: #{tpu_custom_call.1} parent=0
    #allocation2 [shape = 'u8[4096]{0}', space=vmem, size = 0x1000, scoped, tag = 'input window, operand 0, single buffered']
    #allocation3 [shape = 's32[1]{0}', space=sflag, size = 0x4, scoped, tag = 'scoped memory for tpu_custom_call.1']
    #allocation4 [shape = 's32[1]{0}', space=sflag, size = 0x4, scoped, tag = 'scoped memory for tpu_custom_call.1']
    #allocation5 [shape = 'u8[4096]{0}', space=vmem, size = 0x1000, scoped, tag = 'input window, operand 1, single buffered']
    #allocation6 [shape = 's32[1]{0}', space=sflag, size = 0x4, scoped, tag = 'scoped memory for tpu_custom_call.1']
    #allocation7 [shape = 'u8[512]{0}', space=vmem, size = 0x400, scoped, tag = 'output window, operand 0, single buffered']
    %7 = vsyncpa [#allocation3], 0
    %8 = vsyncpa [#allocation6], 0
    %9 = vsyncpa [#allocation4], 0
    // Predicated region
    $region2: #{tpu_custom_call.1} parent=1 // pred_check
      _
    $region3: #{tpu_custom_call.1} parent=1 // pred_check_branch
      %11 = sbr.rel (0) target = $region5
    $region4: #{tpu_custom_call.1} parent=1 // pred_region
      %s13 = ssub.s32 128, 128
      %14 = vsyncadd [#allocation3], %s13
      %s16 = sshll.u32 [#allocation2], 4
      %s17 = int_to_ptr.vmem [resolvable:$true] %s16
      %19 = dma.hbm_to_vmem [thread:$0]  %s0, 128, %s17, [#allocation3]
    $region5: #{tpu_custom_call.1} parent=1 // pred_fallthru
      _
    // Predicated region
    $region6: #{tpu_custom_call.1} parent=1 // pred_check
      _
    $region7: #{tpu_custom_call.1} parent=1 // pred_check_branch
      %21 = sbr.rel (0) target = $region9
    $region8: #{tpu_custom_call.1} parent=1 // pred_region
      %s23 = ssub.s32 128, 128
      %24 = vsyncadd [#allocation6], %s23
      %s26 = sshll.u32 [#allocation5], 4
      %s27 = int_to_ptr.vmem [resolvable:$true] %s26
      %29 = dma.hbm_to_vmem [thread:$0]  %s1, 128, %s27, [#allocation6]
    $region9: #{tpu_custom_call.1} parent=1 // pred_fallthru
      _
    // Predicated region
    $region10: #{tpu_custom_call.1} parent=1 // pred_check
      _
    $region11: #{tpu_custom_call.1} parent=1 // pred_check_branch
      %31 = sbr.rel (0) target = $region13
    $region12: #{tpu_custom_call.1} parent=1 // pred_region
      %32 = dma.done [#allocation3], 128
    $region13: #{tpu_custom_call.1} parent=1 // pred_fallthru
      _
    // Predicated region
    $region14: #{tpu_custom_call.1} parent=1 // pred_check
      _
    $region15: #{tpu_custom_call.1} parent=1 // pred_check_branch
      %34 = sbr.rel (0) target = $region17
    $region16: #{tpu_custom_call.1} parent=1 // pred_region
      %35 = dma.done [#allocation6], 128
    $region17: #{tpu_custom_call.1} parent=1 // pred_fallthru
      _
    %v36 = vld [vmem:[#allocation5] sm:$0xff]
    %v37 = vld [vmem:[#allocation2] sm:$0xff]
    %v38 = vsub.f32 %v36, %v37
    %v39 = vmax.f32 %v38, 0.0
    %v40 = vand.u32 2147483647, %v38
    %v41 = vsub.f32 0.0, %v40
    %v42 = vmul.f32 %v41, 1.442695
    %v43 = vpow.pop %v42
    %v44 = vadd.f32 %v43, 1.0
    %v45 = vlog2.pop %v44
    %v46 = vmul.f32 %v45, 0.6931472
    %v47 = vmul.f32 -0.5, %v43
    %v48 = vadd.f32 %v47, 1.0
    %v49 = vmul.f32 %v48, %v43
    %v50 = vand.u32 2147483647, %v43
    %vm51 = vcmp.lt.f32.partialorder %v50, 0.0004427343
    %v52 = vsel %vm51, %v49, %v46
    %v53 = vadd.f32 %v39, %v52
    %54 = vadd.xlane.f32.xlu0 %v53
    %v55 = vpop.xlane.xlu0 %54
    %v56 = vmul.f32 %v55, 0.0078125
    %v58 = vlaneseq
    %v59 = vand.u32 %v58, 127
    %v60 = vlaneseq
    %v61 = vshrl.u32 %v60, 7
    %v62 = vsub.s32 %v59, %v61
    %v63 = vrot.slane %v56, %v62
    %vm65 = vcmask 57344
    %66 = vst.msk [vmem:[#allocation7] sm:$0x1] %vm65, %v63
    // Predicated region
    $region18: #{tpu_custom_call.1} parent=1 // pred_check
      _
    $region19: #{tpu_custom_call.1} parent=1 // pred_check_branch
      %68 = sbr.rel (0) target = $region21
    $region20: #{tpu_custom_call.1} parent=1 // pred_region
      %s70 = ssub.s32 16, 16
      %71 = vsyncadd [#allocation4], %s70
      %s73 = sshll.u32 [#allocation7], 4
      %s74 = int_to_ptr.vmem [resolvable:$true] %s73
      %76 = dma.vmem_to_hbm [thread:$0]  %s74, 16, %s2, [#allocation4]
    $region21: #{tpu_custom_call.1} parent=1 // pred_fallthru
      _
    // Predicated region
    $region22: #{tpu_custom_call.1} parent=1 // pred_check
      _
    $region23: #{tpu_custom_call.1} parent=1 // pred_check_branch
      %78 = sbr.rel (0) target = $region25
    $region24: #{tpu_custom_call.1} parent=1 // pred_region
      %79 = dma.done [#allocation4], 16
    $region25: #{tpu_custom_call.1} parent=1 // pred_fallthru
      _
    %80 = vsyncpa [#allocation3], 1
    %81 = vsyncpa [#allocation6], 1
    %82 = vsyncpa [#allocation4], 1

</llo_original>
